<compile_context>
chip_gen: v5e
topology: v5e:2x2
jax: 0.10.0
libtpu: 0.0.40
codegen_flags: <defaults>
</compile_context>

<pallas_src>
import functools

import numpy as np
import jax
import jax.numpy as jnp
from jax import lax
from jax.experimental import pallas as pl
from jax.experimental.pallas import tpu as pltpu


def _round_up(x, m):
    return ((x + m - 1) // m) * m


def _head_group(n_heads, dim_head):
    """Smallest divisor G of n_heads with G*dim_head >= 128 (else all heads)."""
    for g in range(1, n_heads + 1):
        if n_heads % g == 0 and g * dim_head >= 128:
            return g
    return n_heads


# --------------------------------------------------------------------------
# Kernel 1: flash-style attention (return_attn=False).  Grid:
# (B, H/G, q-tiles, k-tiles); k-tiles is the ("arbitrary") reduction axis,
# online-softmax state lives in VMEM scratch, output written on the last tile.
# --------------------------------------------------------------------------
def _flash_kernel(*refs, scale, has_bias, kpad, k_len, approx_recip):
    if has_bias:
        q_ref, k_ref, v_ref, bias_ref, o_ref, m_sc, l_sc, acc_sc = refs
    else:
        q_ref, k_ref, v_ref, o_ref, m_sc, l_sc, acc_sc = refs
        bias_ref = None

    ki = pl.program_id(3)
    nk = pl.num_programs(3)

    @pl.when(ki == 0)
    def _init():
        m_sc[...] = jnp.full_like(m_sc, -jnp.inf)
        l_sc[...] = jnp.zeros_like(l_sc)
        acc_sc[...] = jnp.zeros_like(acc_sc)

    q = q_ref[0]                                   # (G, tq, d)
    k = k_ref[0]                                   # (G, tk, d)
    v = v_ref[0]                                   # (G, tk, d)

    # Scores: per-head-group batched matmul contracting d (f32 accumulation).
    s = lax.dot_general(q, k, (((2,), (2,)), ((0,), (0,))),
                        preferred_element_type=jnp.float32) * scale  # (G, tq, tk)
    if has_bias:
        s = s + bias_ref[0].astype(jnp.float32)    # (tq, tk) broadcast over G
    if kpad:
        tq, tk = s.shape[-2], s.shape[-1]
        col = ki * tk + lax.broadcasted_iota(jnp.int32, (tq, tk), 1)
        s = jnp.where(col < k_len, s, -jnp.inf)    # mask padded K columns

    m_prev = m_sc[...]
    m_new = jnp.maximum(m_prev, jnp.max(s, axis=-1, keepdims=True))
    m_safe = jnp.where(m_new == -jnp.inf, 0.0, m_new)   # guard fully-masked rows
    alpha = jnp.exp(m_prev - m_safe)
    p = jnp.exp(s - m_safe)
    l_sc[...] = alpha * l_sc[...] + jnp.sum(p, axis=-1, keepdims=True)
    acc_sc[...] = alpha * acc_sc[...] + lax.dot_general(
        p.astype(v.dtype), v, (((2,), (1,)), ((0,), (0,))),
        preferred_element_type=jnp.float32)
    m_sc[...] = m_new

    @pl.when(ki == nk - 1)
    def _finalize():
        # NOTE: rows fully masked over all of Lk produce NaN (0/0), matching
        # the softmax reference behavior.
        if approx_recip:
            o_ref[0] = (acc_sc[...] * pl.reciprocal(l_sc[...], approx=True)
                        ).astype(o_ref.dtype)
        else:
            o_ref[0] = (acc_sc[...] / l_sc[...]).astype(o_ref.dtype)

    # TODO(synk): attention dropout is identity for the module default p=0.0;
    # a nonzero-dropout variant would use pltpu.prng_seed/prng_random_bits here.


# --------------------------------------------------------------------------
# Kernel 2: single-pass attention that also materializes the (tq, Lk)
# attention-weight block (return_attn=True path).  K/V blocks are per head
# group (G*d wide), not E wide, so VMEM stays small even on v7x.
# --------------------------------------------------------------------------
def _attn_weights_kernel(*refs, scale, has_bias, kpad, k_len, approx_recip):
    if has_bias:
        q_ref, k_ref, v_ref, bias_ref, o_ref, attn_ref = refs
    else:
        q_ref, k_ref, v_ref, o_ref, attn_ref = refs
        bias_ref = None

    q = q_ref[0]                                   # (G, tq, d)
    k = k_ref[0]                                   # (G, Lk_p, d)
    v = v_ref[0]                                   # (G, Lk_p, d)

    s = lax.dot_general(q, k, (((2,), (2,)), ((0,), (0,))),
                        preferred_element_type=jnp.float32) * scale  # (G, tq, Lk_p)
    if has_bias:
        s = s + bias_ref[0].astype(jnp.float32)
    if kpad:
        tq, lk = s.shape[-2], s.shape[-1]
        col = lax.broadcasted_iota(jnp.int32, (tq, lk), 1)
        s = jnp.where(col < k_len, s, -jnp.inf)

    m = jnp.max(s, axis=-1, keepdims=True)
    m = jnp.where(m == -jnp.inf, 0.0, m)           # fully-masked rows -> 0/0 NaN
    e = jnp.exp(s - m)
    denom = jnp.sum(e, axis=-1, keepdims=True)
    if approx_recip:
        p = e * pl.reciprocal(denom, approx=True)
    else:
        p = e / denom

    attn_ref[0] = p.astype(attn_ref.dtype)
    o_ref[0] = lax.dot_general(p.astype(v.dtype), v, (((2,), (1,)), ((0,), (0,))),
                               preferred_element_type=jnp.float32
                               ).astype(o_ref.dtype)


# --------------------------------------------------------------------------
# Wrapper
# --------------------------------------------------------------------------
def attention_pallas(q, k, v, wq, wk, wv, attn_mask=None, *, n_heads=8,
                     return_attn=False, block_q=256, block_k=256,
                     compute_dtype=None, vmem_limit_bytes=None):
    """Pallas implementation of Attention.forward(q, k, v, attn_mask, return_attn).

    q : (B, Lq, E); k/v : (B, Lk, E); wq/wk/wv : (E, E) torch.nn.Linear layout
    (out_features, in_features), bias=False.  attn_mask: optional bool of
    shape (Lq, Lk) or (B, Lq, Lk).  Returns `out` (B, Lq, E) and, when
    return_attn=True, also `attn` (B, H, Lq, Lk) in the input dtype.
    """
    B, Lq, E = q.shape
    Bk, Lk, Ek = k.shape
    assert Bk == B and Ek == E and v.shape == (B, Lk, E)
    assert E % n_heads == 0, "embed_dim must be divisible by num_heads"
    H = n_heads
    d = E // H
    scale = float(d) ** -0.5
    out_dtype = q.dtype
    compute_dt = (np.dtype(q.dtype) if compute_dtype is None
                  else np.dtype(compute_dtype))
    approx_recip = bool(np.dtype(out_dtype) == np.dtype(jnp.bfloat16))

    # ---- hoisted projections (torch Linear: y = x @ W.T) + head-major split.
    qp = jnp.einsum("ble,oe->blo", q, wq)
    kp = jnp.einsum("ble,oe->blo", k, wk)
    vp = jnp.einsum("ble,oe->blo", v, wv)
    qh = qp.reshape(B, Lq, H, d).transpose(0, 2, 1, 3).astype(compute_dt)
    kh = kp.reshape(B, Lk, H, d).transpose(0, 2, 1, 3).astype(compute_dt)
    vh = vp.reshape(B, Lk, H, d).transpose(0, 2, 1, 3).astype(compute_dt)

    # ---- tile sizes + padding (cdiv grids instead of giant full-extent tiles)
    has_bias = attn_mask is not None
    if Lq <= block_q:
        tq = Lq
    else:
        tq = _round_up(block_q, 8)
    if Lk <= block_k:
        tk = Lk
    else:
        tk = _round_up(block_k, 8)
        if has_bias and tk % 128 != 0:
            tk = _round_up(tk, 128)     # bias block's lane dim must be 128-aligned
    Lq_p = _round_up(Lq, tq)
    Lk_p = _round_up(Lk, tk)
    kpad = Lk_p != Lk

    if Lq_p != Lq:
        qh = jnp.pad(qh, ((0, 0), (0, 0), (0, Lq_p - Lq), (0, 0)))
    if kpad:
        kh = jnp.pad(kh, ((0, 0), (0, 0), (0, Lk_p - Lk), (0, 0)))
        vh = jnp.pad(vh, ((0, 0), (0, 0), (0, Lk_p - Lk), (0, 0)))

    # ---- boolean mask -> compact bf16 additive bias (0 / -inf) -------------
    bias = None
    bias_batched = False
    if has_bias:
        assert attn_mask.dtype == jnp.bool_
        assert attn_mask.shape in ((Lq, Lk), (B, Lq, Lk))
        mask3 = attn_mask[None] if attn_mask.ndim == 2 else attn_mask
        bias = jnp.where(mask3, 0.0, -jnp.inf).astype(jnp.bfloat16)
        bias = jnp.pad(bias, ((0, 0), (0, Lq_p - Lq), (0, Lk_p - Lk)))
        bias_batched = bias.shape[0] == B

    # ---- head grouping so each grid step works on >=128 lanes of head data -
    G = _head_group(H, d)
    HG = H // G
    grid_q = Lq_p // tq

    def _cparams(sem):
        kw = dict(dimension_semantics=sem)
        if vmem_limit_bytes is not None:
            kw["vmem_limit_bytes"] = vmem_limit_bytes
        return pltpu.CompilerParams(**kw)

    if return_attn:
        # ----- path 1: materialize the attention weights (O(Lq*Lk)) ---------
        in_specs = [
            pl.BlockSpec((1, G, tq, d), lambda b, hg, qi: (b, hg, qi, 0)),
            pl.BlockSpec((1, G, Lk_p, d), lambda b, hg, qi: (b, hg, 0, 0)),
            pl.BlockSpec((1, G, Lk_p, d), lambda b, hg, qi: (b, hg, 0, 0)),
        ]
        args = [qh, kh, vh]
        if has_bias:
            if bias_batched:
                in_specs.append(pl.BlockSpec((1, tq, Lk_p),
                                             lambda b, hg, qi: (b, qi, 0)))
            else:
                in_specs.append(pl.BlockSpec((1, tq, Lk_p),
                                             lambda b, hg, qi: (0, qi, 0)))
            args.append(bias)

        kernel = functools.partial(_attn_weights_kernel, scale=scale,
                                   has_bias=has_bias, kpad=kpad, k_len=Lk,
                                   approx_recip=approx_recip)
        out_hm, attn_p = pl.pallas_call(
            kernel,
            out_shape=(
                jax.ShapeDtypeStruct((B, H, Lq_p, d), out_dtype),
                jax.ShapeDtypeStruct((B, H, Lq_p, Lk_p), out_dtype),
            ),
            grid_spec=pltpu.PrefetchScalarGridSpec(
                num_scalar_prefetch=0,
                grid=(B, HG, grid_q),
                in_specs=in_specs,
                out_specs=[
                    pl.BlockSpec((1, G, tq, d), lambda b, hg, qi: (b, hg, qi, 0)),
                    pl.BlockSpec((1, G, tq, Lk_p),
                                 lambda b, hg, qi: (b, hg, qi, 0)),
                ],
            ),
            compiler_params=_cparams(("parallel", "parallel", "parallel")),
        )(*args)
        out = out_hm[:, :, :Lq, :].transpose(0, 2, 1, 3).reshape(B, Lq, E)
        attn = attn_p[:, :, :Lq, :Lk]
        # TODO(synk): project_out=False -> to_out is Identity; dropout p=0.0.
        return out, attn

    # ----- path 2: flash-style, no attention-weights output -----------------
    grid = (B, HG, grid_q, Lk_p // tk)
    in_specs = [
        pl.BlockSpec((1, G, tq, d), lambda b, hg, qi, ki: (b, hg, qi, 0)),
        pl.BlockSpec((1, G, tk, d), lambda b, hg, qi, ki: (b, hg, ki, 0)),
        pl.BlockSpec((1, G, tk, d), lambda b, hg, qi, ki: (b, hg, ki, 0)),
    ]
    args = [qh, kh, vh]
    if has_bias:
        if bias_batched:
            in_specs.append(pl.BlockSpec((1, tq, tk),
                                         lambda b, hg, qi, ki: (b, qi, ki)))
        else:
            in_specs.append(pl.BlockSpec((1, tq, tk),
                                         lambda b, hg, qi, ki: (0, qi, ki)))
        args.append(bias)

    kernel = functools.partial(_flash_kernel, scale=scale, has_bias=has_bias,
                               kpad=kpad, k_len=Lk, approx_recip=approx_recip)
    out_hm = pl.pallas_call(
        kernel,
        out_shape=jax.ShapeDtypeStruct((B, H, Lq_p, d), out_dtype),
        grid_spec=pltpu.PrefetchScalarGridSpec(
            num_scalar_prefetch=0,
            grid=grid,
            in_specs=in_specs,
            # Output block constant over the Lk (reduction) axis.
            out_specs=pl.BlockSpec((1, G, tq, d),
                                   lambda b, hg, qi, ki: (b, hg, qi, 0)),
            scratch_shapes=[
                pltpu.VMEM((G, tq, 1), jnp.float32),   # running max
                pltpu.VMEM((G, tq, 1), jnp.float32),   # running denominator
                pltpu.VMEM((G, tq, d), jnp.float32),   # output accumulator
            ],
        ),
        compiler_params=_cparams(
            ("parallel", "parallel", "parallel", "arbitrary")),
    )(*args)
    out = out_hm[:, :, :Lq, :].transpose(0, 2, 1, 3).reshape(B, Lq, E)
    # TODO(synk): project_out=False -> to_out is Identity; dropout p=0.0.
    return out


# --------------------------------------------------------------------------
# Plain-JAX reference mirroring the PyTorch forward.
# --------------------------------------------------------------------------
def attention_reference(q, k, v, wq, wk, wv, attn_mask=None, *, n_heads=8):
    B, Lq, E = q.shape
    _, Lk, _ = k.shape
    d = E // n_heads
    scale = float(d) ** -0.5
    qp = jnp.einsum("bne,oe->bno", q, wq)
    kp = jnp.einsum("bne,oe->bno", k, wk)
    vp = jnp.einsum("bne,oe->bno", v, wv)
    qh = qp.reshape(B, Lq, n_heads, d).transpose(0, 2, 1, 3)
    kh = kp.reshape(B, Lk, n_heads, d).transpose(0, 2, 1, 3)
    vh = vp.reshape(B, Lk, n_heads, d).transpose(0, 2, 1, 3)
    s = jnp.einsum("bhqd,bhkd->bhqk", qh, kh) * scale
    if attn_mask is not None:
        bias = jnp.where(attn_mask, 0.0, -jnp.inf)
        bias = bias[None, None] if attn_mask.ndim == 2 else bias[:, None]
        s = s + bias
    attn = jax.nn.softmax(s, axis=-1)
    o = jnp.einsum("bhqk,bhkd->bhqd", attn, vh)
    out = o.transpose(0, 2, 1, 3).reshape(B, Lq, E)
    return out, attn


if __name__ == "__main__":
    # Small shapes consistent with the module: batch=2, seq=8, embed_dim=32, heads=8.
    B, L, E, H = 2, 8, 32, 8
    key = jax.random.PRNGKey(0)
    ks = jax.random.split(key, 8)
    q = jax.random.normal(ks[0], (B, L, E), dtype=jnp.float32)
    k = jax.random.normal(ks[1], (B, L, E), dtype=jnp.float32)
    v = jax.random.normal(ks[2], (B, L, E), dtype=jnp.float32)
    # torch.nn.Linear weight layout: (out_features, in_features), bias=False.
    wq = jax.random.normal(ks[3], (E, E), dtype=jnp.float32) * (E ** -0.5)
    wk = jax.random.normal(ks[4], (E, E), dtype=jnp.float32) * (E ** -0.5)
    wv = jax.random.normal(ks[5], (E, E), dtype=jnp.float32) * (E ** -0.5)
    mask = jnp.tril(jnp.ones((L, L), dtype=jnp.bool_))   # causal bool mask

    ref_out, ref_attn = attention_reference(q, k, v, wq, wk, wv,
                                            attn_mask=mask, n_heads=H)

    # Path 1: return_attn=True (full attention weights materialized).
    out, attn = attention_pallas(q, k, v, wq, wk, wv, attn_mask=mask,
                                 n_heads=H, return_attn=True)
    jax.block_until_ready(out); jax.block_until_ready(attn)
    assert jnp.allclose(out, ref_out, atol=1e-2, rtol=1e-2), "out mismatch (weights path)"
    assert jnp.allclose(attn, ref_attn, atol=1e-2, rtol=1e-2), "attn mismatch"

    # Path 2: flash-style with mask.
    out2 = attention_pallas(q, k, v, wq, wk, wv, attn_mask=mask, n_heads=H)
    jax.block_until_ready(out2)
    assert jnp.allclose(out2, ref_out, atol=1e-2, rtol=1e-2), "out mismatch (flash path)"

    # No-mask path.
    ref_nm, _ = attention_reference(q, k, v, wq, wk, wv, attn_mask=None, n_heads=H)
    out3 = attention_pallas(q, k, v, wq, wk, wv, attn_mask=None, n_heads=H)
    jax.block_until_ready(out3)
    assert jnp.allclose(out3, ref_nm, atol=1e-2, rtol=1e-2), "out mismatch (no mask)"

    # bf16 inputs (native MXU width) — loose tolerance vs the f32 reference.
    qb, kb, vb = (x.astype(jnp.bfloat16) for x in (q, k, v))
    wqb, wkb, wvb = (w.astype(jnp.bfloat16) for w in (wq, wk, wv))
    out_bf = attention_pallas(qb, kb, vb, wqb, wkb, wvb, attn_mask=mask, n_heads=H)
    jax.block_until_ready(out_bf)
    assert jnp.allclose(out_bf.astype(jnp.float32), ref_out,
                        atol=1e-1, rtol=1e-1), "out mismatch (bf16)"

    # Multi-tile / padded flash path: L=24 with 16-wide tiles forces q/k
    # padding, a 2-step online-softmax sweep and the iota column mask.
    L2 = 24
    q2 = jax.random.normal(ks[6], (B, L2, E), dtype=jnp.float32)
    k2 = jax.random.normal(ks[7], (B, L2, E), dtype=jnp.float32)
    v2 = jax.random.normal(ks[0], (B, L2, E), dtype=jnp.float32)
    ref2, _ = attention_reference(q2, k2, v2, wq, wk, wv, attn_mask=None, n_heads=H)
    out4 = attention_pallas(q2, k2, v2, wq, wk, wv, attn_mask=None, n_heads=H,
                            block_q=16, block_k=16)
    jax.block_until_ready(out4)
    assert jnp.allclose(out4, ref2, atol=1e-2, rtol=1e-2), "out mismatch (tiled/padded)"

    # Batched boolean mask + q tiling (K un-tiled so the bias block stays
    # lane-dense at these small test sizes).
    mask2 = jnp.broadcast_to(jnp.tril(jnp.ones((L2, L2), dtype=jnp.bool_)),
                             (B, L2, L2))
    ref3, _ = attention_reference(q2, k2, v2, wq, wk, wv, attn_mask=mask2, n_heads=H)
    out5 = attention_pallas(q2, k2, v2, wq, wk, wv, attn_mask=mask2, n_heads=H,
                            block_q=16, block_k=128)
    jax.block_until_ready(out5)
    assert jnp.allclose(out5, ref3, atol=1e-2, rtol=1e-2), "out mismatch (batched mask)"

    print("KERNEL_OK")
</pallas_src>

<mosaic_0001>
module attributes {stable_mosaic.version = 11 : i64} {
  func.func @_attn_weights_kernel(%arg0: i32, %arg1: i32, %arg2: i32, %arg3: memref<1x8x8x4xf32, #tpu.memory_space<vmem>>, %arg4: memref<1x8x8x4xf32, #tpu.memory_space<vmem>>, %arg5: memref<1x8x8x4xf32, #tpu.memory_space<vmem>>, %arg6: memref<1x8x8xbf16, #tpu.memory_space<vmem>>, %arg7: memref<1x8x8x4xf32, #tpu.memory_space<vmem>>, %arg8: memref<1x8x8x8xf32, #tpu.memory_space<vmem>>) attributes {dimension_semantics = [#tpu.dimension_semantics<parallel>, #tpu.dimension_semantics<parallel>, #tpu.dimension_semantics<parallel>], iteration_bounds = array<i64: 2, 1, 1>, scalar_prefetch = 0 : i64, scratch_operands = 0 : i64, tpu.core_type = #tpu.core_type<tc>, window_params = [{transform_indices = @transform_0, window_bounds = array<i64: 1, 8, 8, 4>}, {transform_indices = @transform_1, window_bounds = array<i64: 1, 8, 8, 4>}, {transform_indices = @transform_2, window_bounds = array<i64: 1, 8, 8, 4>}, {transform_indices = @transform_3, window_bounds = array<i64: 1, 8, 8>}, {transform_indices = @transform_4, window_bounds = array<i64: 1, 8, 8, 4>}, {transform_indices = @transform_5, window_bounds = array<i64: 1, 8, 8, 8>}]} {
    %c0 = arith.constant 0 : index
    %c0_0 = arith.constant 0 : index
    %c0_1 = arith.constant 0 : index
    %c0_2 = arith.constant 0 : index
    %0 = vector.load %arg3[%c0, %c0_0, %c0_1, %c0_2] : memref<1x8x8x4xf32, #tpu.memory_space<vmem>>, vector<1x8x8x4xf32>
    %1 = vector.shape_cast %0 : vector<1x8x8x4xf32> to vector<8x8x4xf32>
    %c0_3 = arith.constant 0 : index
    %c0_4 = arith.constant 0 : index
    %c0_5 = arith.constant 0 : index
    %c0_6 = arith.constant 0 : index
    %2 = vector.load %arg4[%c0_3, %c0_4, %c0_5, %c0_6] : memref<1x8x8x4xf32, #tpu.memory_space<vmem>>, vector<1x8x8x4xf32>
    %3 = vector.shape_cast %2 : vector<1x8x8x4xf32> to vector<8x8x4xf32>
    %c0_7 = arith.constant 0 : index
    %c0_8 = arith.constant 0 : index
    %c0_9 = arith.constant 0 : index
    %c0_10 = arith.constant 0 : index
    %4 = vector.load %arg5[%c0_7, %c0_8, %c0_9, %c0_10] : memref<1x8x8x4xf32, #tpu.memory_space<vmem>>, vector<1x8x8x4xf32>
    %5 = vector.shape_cast %4 : vector<1x8x8x4xf32> to vector<8x8x4xf32>
    %cst = arith.constant dense<0.000000e+00> : vector<8x8x8xf32>
    %6 = tpu.matmul %1, %3, %cst {dimension_numbers = #tpu.dot_dimension_numbers<[2], [2], [1], [1], [0, 0, 0, 1, 1, 1], [0], [0]>} : vector<8x8x4xf32>, vector<8x8x4xf32>, vector<8x8x8xf32> -> vector<8x8x8xf32>
    %cst_11 = arith.constant 5.000000e-01 : f32
    %7 = vector.broadcast %cst_11 : f32 to vector<8x8x8xf32>
    %8 = arith.mulf %6, %7 : vector<8x8x8xf32>
    %c0_12 = arith.constant 0 : index
    %c0_13 = arith.constant 0 : index
    %c0_14 = arith.constant 0 : index
    %9 = vector.load %arg6[%c0_12, %c0_13, %c0_14] : memref<1x8x8xbf16, #tpu.memory_space<vmem>>, vector<1x8x8xbf16>
    %10 = vector.shape_cast %9 : vector<1x8x8xbf16> to vector<8x8xbf16>
    %11 = arith.extf %10 : vector<8x8xbf16> to vector<8x8xf32>
    %12 = vector.shape_cast %11 : vector<8x8xf32> to vector<1x8x8xf32>
    %13 = vector.broadcast %12 : vector<1x8x8xf32> to vector<8x8x8xf32>
    %14 = arith.addf %8, %13 : vector<8x8x8xf32>
    %cst_15 = arith.constant dense<0xFF800000> : vector<8x8xf32>
    %15 = vector.multi_reduction <maximumf>, %14, %cst_15 [2] : vector<8x8x8xf32> to vector<8x8xf32>
    %16 = vector.shape_cast %15 : vector<8x8xf32> to vector<8x8x1xf32>
    %cst_16 = arith.constant 0xFF800000 : f32
    %17 = vector.broadcast %cst_16 : f32 to vector<8x8x1xf32>
    %18 = arith.cmpf oeq, %16, %17 : vector<8x8x1xf32>
    %cst_17 = arith.constant 0.000000e+00 : f32
    %19 = vector.broadcast %cst_17 : f32 to vector<8x8x1xf32>
    %20 = arith.select %18, %19, %16 : vector<8x8x1xi1>, vector<8x8x1xf32>
    %21 = vector.broadcast %20 : vector<8x8x1xf32> to vector<8x8x8xf32>
    %22 = arith.subf %14, %21 : vector<8x8x8xf32>
    %23 = math.exp %22 : vector<8x8x8xf32>
    %cst_18 = arith.constant dense<0.000000e+00> : vector<8x8xf32>
    %24 = vector.multi_reduction <add>, %23, %cst_18 [2] : vector<8x8x8xf32> to vector<8x8xf32>
    %25 = vector.shape_cast %24 : vector<8x8xf32> to vector<8x8x1xf32>
    %26 = vector.broadcast %25 : vector<8x8x1xf32> to vector<8x8x8xf32>
    %27 = arith.divf %23, %26 : vector<8x8x8xf32>
    %c0_19 = arith.constant 0 : index
    %c0_20 = arith.constant 0 : index
    %c0_21 = arith.constant 0 : index
    %c0_22 = arith.constant 0 : index
    %28 = vector.load %arg8[%c0_19, %c0_20, %c0_21, %c0_22] : memref<1x8x8x8xf32, #tpu.memory_space<vmem>>, vector<1x8x8x8xf32>
    %29 = vector.shape_cast %28 : vector<1x8x8x8xf32> to vector<8x8x8xf32>
    %30 = vector.shape_cast %27 : vector<8x8x8xf32> to vector<1x8x8x8xf32>
    tpu.vector_store %arg8[%c0_19, %c0_20, %c0_21, %c0_22], %30 {strides = array<i32>} : memref<1x8x8x8xf32, #tpu.memory_space<vmem>>, vector<1x8x8x8xf32>,
    %cst_23 = arith.constant dense<0.000000e+00> : vector<8x8x4xf32>
    %31 = tpu.matmul %27, %5, %cst_23 {dimension_numbers = #tpu.dot_dimension_numbers<[2], [1], [1], [2], [0, 0, 0, 1, 1, 2], [0], [0]>} : vector<8x8x8xf32>, vector<8x8x4xf32>, vector<8x8x4xf32> -> vector<8x8x4xf32>
    %c0_24 = arith.constant 0 : index
    %c0_25 = arith.constant 0 : index
    %c0_26 = arith.constant 0 : index
    %c0_27 = arith.constant 0 : index
    %32 = vector.load %arg7[%c0_24, %c0_25, %c0_26, %c0_27] : memref<1x8x8x4xf32, #tpu.memory_space<vmem>>, vector<1x8x8x4xf32>
    %33 = vector.shape_cast %32 : vector<1x8x8x4xf32> to vector<8x8x4xf32>
    %34 = vector.shape_cast %31 : vector<8x8x4xf32> to vector<1x8x8x4xf32>
    tpu.vector_store %arg7[%c0_24, %c0_25, %c0_26, %c0_27], %34 {strides = array<i32>} : memref<1x8x8x4xf32, #tpu.memory_space<vmem>>, vector<1x8x8x4xf32>,
    return
  }
  func.func @transform_0(%arg0: i32, %arg1: i32, %arg2: i32) -> (i32, i32, i32, i32) {
    %c0_i32 = arith.constant 0 : i32
    %c0_i32_0 = arith.constant 0 : i32
    return %arg0, %arg1, %arg2, %c0_i32 : i32, i32, i32, i32
  }
  func.func @transform_1(%arg0: i32, %arg1: i32, %arg2: i32) -> (i32, i32, i32, i32) {
    %c0_i32 = arith.constant 0 : i32
    %c0_i32_0 = arith.constant 0 : i32
    %c0_i32_1 = arith.constant 0 : i32
    return %arg0, %arg1, %c0_i32, %c0_i32_0 : i32, i32, i32, i32
  }
  func.func @transform_2(%arg0: i32, %arg1: i32, %arg2: i32) -> (i32, i32, i32, i32) {
    %c0_i32 = arith.constant 0 : i32
    %c0_i32_0 = arith.constant 0 : i32
    %c0_i32_1 = arith.constant 0 : i32
    return %arg0, %arg1, %c0_i32, %c0_i32_0 : i32, i32, i32, i32
  }
  func.func @transform_3(%arg0: i32, %arg1: i32, %arg2: i32) -> (i32, i32, i32) {
    %c0_i32 = arith.constant 0 : i32
    %c0_i32_0 = arith.constant 0 : i32
    %c0_i32_1 = arith.constant 0 : i32
    return %c0_i32, %arg2, %c0_i32_0 : i32, i32, i32
  }
  func.func @transform_4(%arg0: i32, %arg1: i32, %arg2: i32) -> (i32, i32, i32, i32) {
    %c0_i32 = arith.constant 0 : i32
    %c0_i32_0 = arith.constant 0 : i32
    return %arg0, %arg1, %arg2, %c0_i32 : i32, i32, i32, i32
  }
  func.func @transform_5(%arg0: i32, %arg1: i32, %arg2: i32) -> (i32, i32, i32, i32) {
    %c0_i32 = arith.constant 0 : i32
    %c0_i32_0 = arith.constant 0 : i32
    return %arg0, %arg1, %arg2, %c0_i32 : i32, i32, i32, i32
  }
}

</mosaic_0001>

<llo_original>
// kernel: tpu_custom_call.1
$region0: #{tpu_custom_call.1}
  #allocation0 [shape = 'u32[]', space=smem, size = 0x4, offset = 0x4, fixed_abs, tag = 'smem constant byte address 0x4 - core index']
  #allocation1 [shape = 'u32[72,128]{1,0:T(1,128)}', space=vmem, size = 0x9000, scoped, tag = 'internal scratch']
  %s0 = inlined_call_operand.vmem [shape: f32[2,8,8,4], index: 0, kind: input, shape index: {}]
  %s1 = inlined_call_operand.vmem [shape: f32[2,8,8,4], index: 1, kind: input, shape index: {}]
  %s2 = inlined_call_operand.vmem [shape: f32[2,8,8,4], index: 2, kind: input, shape index: {}]
  %s3 = inlined_call_operand.vmem [shape: bf16[1,8,8], index: 3, kind: input, shape index: {}]
  %s4 = inlined_call_operand.vmem [shape: f32[2,8,8,4], index: 4, kind: output, shape index: {0}]
  %s5 = inlined_call_operand.hbm [shape: f32[2,8,8,8], index: 5, kind: output, shape index: {1}]
  %6 = xla_tuple %s4, %s5
  %s7 = sld [smem:[#allocation0]]
  $region57: #{tpu_custom_call.1} parent=0
    _
  %s9 = ssub.s32 1, %s7
  %s10 = scalar_select 0, %s9, %s7
  $region1: #{tpu_custom_call.1} parent=0
    #allocation2 [shape = 'u8[65536]{0}', space=vmem, size = 0x10000, scoped, tag = 'output window, operand 1']
    #allocation3 [shape = 's32[2]{0}', space=sflag, size = 0x8, scoped, tag = 'scoped memory for tpu_custom_call.1']
    %11 = vsyncpa [#allocation3], 0
    %s12 = scalar_lea.sflag [#allocation3], 1
    %13 = vsyncpa %s12, 0
    loop: start=0, step=1, limit=4
    $region2: #{tpu_custom_call.1} parent=1 // loop_pre_header
      _
    $region3: #{tpu_custom_call.1} parent=1 // loop_header
      %s15 = sphi 0, %s19
      %p16 = scmp.ge.s32.totalorder %s15, 4
      %s22 = sphi 0, %s41
      %s23 = sphi 0, %s37
      %s24 = sphi 0, %s33
      %s25 = sphi 0, %s22
      %s26 = sphi 0, %s23
      %s27 = sphi 0, %s24
      %s28 = sphi 0, %s25
      %s29 = sphi 0, %s26
      %s30 = sphi 0, %s27
      %s48 = sphi 0, %s50
      %s51 = sphi 0, %s48
      %s52 = sphi 0, %s51
      %s68 = sphi 0, %s52
      %s76 = sphi 0, %s78
      %s79 = sphi 0, %s76
      %s80 = sphi 0, %s79
      %s96 = sphi 0, %s80
      %s104 = sphi 0, %s106
      %s107 = sphi 0, %s104
      %s108 = sphi 0, %s107
      %s124 = sphi 0, %s108
      %s130 = sphi 0, %s132
      %s133 = sphi 0, %s130
      %s134 = sphi 0, %s133
      %s150 = sphi 0, %s134
      %s160 = sphi 0, %s162
      %s163 = sphi 0, %s160
      %s164 = sphi 0, %s163
      %s180 = sphi 0, %s164
      %s190 = sphi 0, %s192
      %s193 = sphi 0, %s190
      %s194 = sphi 0, %s193
      %s210 = sphi 0, %s194
    $region4: #{tpu_custom_call.1} parent=1 // loop_header_branch
      %18 = sbr.rel (%p16) target = $region8
    $region5: #{tpu_custom_call.1} parent=1 // loop_body
      %s20 = ssub.s32 %s15, 1
      %s21 = ssub.s32 %s15, 2
      %s31 = sadd.s32 1, %s24
      %p32 = scmp.ge.s32.totalorder %s31, 1
      %s33 = scalar_select %p32, 0, %s31
      %s34 = sadd.s32 1, %s23
      %s35 = scalar_select %p32, %s34, %s23
      %p36 = scmp.ge.s32.totalorder %s35, 1
      %s37 = scalar_select %p36, 0, %s35
      %s38 = sadd.s32 1, %s22
      %s39 = scalar_select %p36, %s38, %s22
      %p40 = scmp.ge.s32.totalorder %s39, 2
      %s41 = scalar_select %p40, 0, %s39
      %s42 = ssub.s32 %s22, %s41
      %s43 = ssub.s32 %s23, %s37
      %s44 = sor.u32 %s42, %s43
      %s45 = ssub.s32 %s24, %s33
      %s46 = sor.u32 %s44, %s45
      %p47 = scmp.eq.s32.totalorder %s46, 0
      %s49 = sadd.s32 %s48, 1
      %s50 = scalar_select %p47, %s48, %s49
      %p53 = pneg %p47
      %p54 = scmp.eq.s32.totalorder %s15, 1
      %p55 = por %p53, %p54
      %p56 = scmp.ne.s32.totalorder %s48, %s51
      %p57 = scmp.eq.s32.totalorder %s15, 0
      %p58 = por %p56, %p57
      %p59 = scmp.ne.s32.totalorder %s48, %s51
      %p60 = scmp.eq.s32.totalorder %s20, 1
      %p61 = por %p59, %p60
      %p62 = scmp.ne.s32.totalorder %s51, %s52
      %p63 = scmp.eq.s32.totalorder %s20, 0
      %p64 = por %p62, %p63
      %p65 = scmp.ne.s32.totalorder %s51, %s52
      %p66 = scmp.eq.s32.totalorder %s21, 1
      %p67 = por %p65, %p66
      %p69 = scmp.ne.s32.totalorder %s52, %s68
      %p70 = scmp.eq.s32.totalorder %s21, 0
      %p71 = por %p69, %p70
      %s72 = ssub.s32 %s22, %s41
      %s73 = ssub.s32 %s23, %s37
      %s74 = sor.u32 %s72, %s73
      %p75 = scmp.eq.s32.totalorder %s74, 0
      %s77 = sadd.s32 %s76, 1
      %s78 = scalar_select %p75, %s76, %s77
      %p81 = pneg %p75
      %p82 = scmp.eq.s32.totalorder %s15, 1
      %p83 = por %p81, %p82
      %p84 = scmp.ne.s32.totalorder %s76, %s79
      %p85 = scmp.eq.s32.totalorder %s15, 0
      %p86 = por %p84, %p85
      %p87 = scmp.ne.s32.totalorder %s76, %s79
      %p88 = scmp.eq.s32.totalorder %s20, 1
      %p89 = por %p87, %p88
      %p90 = scmp.ne.s32.totalorder %s79, %s80
      %p91 = scmp.eq.s32.totalorder %s20, 0
      %p92 = por %p90, %p91
      %p93 = scmp.ne.s32.totalorder %s79, %s80
      %p94 = scmp.eq.s32.totalorder %s21, 1
      %p95 = por %p93, %p94
      %p97 = scmp.ne.s32.totalorder %s80, %s96
      %p98 = scmp.eq.s32.totalorder %s21, 0
      %p99 = por %p97, %p98
      %s100 = ssub.s32 %s22, %s41
      %s101 = ssub.s32 %s23, %s37
      %s102 = sor.u32 %s100, %s101
      %p103 = scmp.eq.s32.totalorder %s102, 0
      %s105 = sadd.s32 %s104, 1
      %s106 = scalar_select %p103, %s104, %s105
      %p109 = pneg %p103
      %p110 = scmp.eq.s32.totalorder %s15, 1
      %p111 = por %p109, %p110
      %p112 = scmp.ne.s32.totalorder %s104, %s107
      %p113 = scmp.eq.s32.totalorder %s15, 0
      %p114 = por %p112, %p113
      %p115 = scmp.ne.s32.totalorder %s104, %s107
      %p116 = scmp.eq.s32.totalorder %s20, 1
      %p117 = por %p115, %p116
      %p118 = scmp.ne.s32.totalorder %s107, %s108
      %p119 = scmp.eq.s32.totalorder %s20, 0
      %p120 = por %p118, %p119
      %p121 = scmp.ne.s32.totalorder %s107, %s108
      %p122 = scmp.eq.s32.totalorder %s21, 1
      %p123 = por %p121, %p122
      %p125 = scmp.ne.s32.totalorder %s108, %s124
      %p126 = scmp.eq.s32.totalorder %s21, 0
      %p127 = por %p125, %p126
      %s128 = ssub.s32 %s24, %s33
      %p129 = scmp.eq.s32.totalorder %s128, 0
      %s131 = sadd.s32 %s130, 1
      %s132 = scalar_select %p129, %s130, %s131
      %p135 = pneg %p129
      %p136 = scmp.eq.s32.totalorder %s15, 1
      %p137 = por %p135, %p136
      %p138 = scmp.ne.s32.totalorder %s130, %s133
      %p139 = scmp.eq.s32.totalorder %s15, 0
      %p140 = por %p138, %p139
      %p141 = scmp.ne.s32.totalorder %s130, %s133
      %p142 = scmp.eq.s32.totalorder %s20, 1
      %p143 = por %p141, %p142
      %p144 = scmp.ne.s32.totalorder %s133, %s134
      %p145 = scmp.eq.s32.totalorder %s20, 0
      %p146 = por %p144, %p145
      %p147 = scmp.ne.s32.totalorder %s133, %s134
      %p148 = scmp.eq.s32.totalorder %s21, 1
      %p149 = por %p147, %p148
      %p151 = scmp.ne.s32.totalorder %s134, %s150
      %p152 = scmp.eq.s32.totalorder %s21, 0
      %p153 = por %p151, %p152
      %s154 = ssub.s32 %s22, %s41
      %s155 = ssub.s32 %s23, %s37
      %s156 = sor.u32 %s154, %s155
      %s157 = ssub.s32 %s24, %s33
      %s158 = sor.u32 %s156, %s157
      %p159 = scmp.eq.s32.totalorder %s158, 0
      %s161 = sadd.s32 %s160, 1
      %s162 = scalar_select %p159, %s160, %s161
      %p165 = pneg %p159
      %p166 = scmp.eq.s32.totalorder %s15, 1
      %p167 = por %p165, %p166
      %p168 = scmp.ne.s32.totalorder %s160, %s163
      %p169 = scmp.eq.s32.totalorder %s15, 0
      %p170 = por %p168, %p169
      %p171 = scmp.ne.s32.totalorder %s160, %s163
      %p172 = scmp.eq.s32.totalorder %s20, 1
      %p173 = por %p171, %p172
      %p174 = scmp.ne.s32.totalorder %s163, %s164
      %p175 = scmp.eq.s32.totalorder %s20, 0
      %p176 = por %p174, %p175
      %p177 = scmp.ne.s32.totalorder %s163, %s164
      %p178 = scmp.eq.s32.totalorder %s21, 1
      %p179 = por %p177, %p178
      %p181 = scmp.ne.s32.totalorder %s164, %s180
      %p182 = scmp.eq.s32.totalorder %s21, 0
      %p183 = por %p181, %p182
      %s184 = ssub.s32 %s22, %s41
      %s185 = ssub.s32 %s23, %s37
      %s186 = sor.u32 %s184, %s185
      %s187 = ssub.s32 %s24, %s33
      %s188 = sor.u32 %s186, %s187
      %p189 = scmp.eq.s32.totalorder %s188, 0
      %s191 = sadd.s32 %s190, 1
      %s192 = scalar_select %p189, %s190, %s191
      %p195 = pneg %p189
      %p196 = scmp.eq.s32.totalorder %s15, 1
      %p197 = por %p195, %p196
      %p198 = scmp.ne.s32.totalorder %s190, %s193
      %p199 = scmp.eq.s32.totalorder %s15, 0
      %p200 = por %p198, %p199
      %p201 = scmp.ne.s32.totalorder %s190, %s193
      %p202 = scmp.eq.s32.totalorder %s20, 1
      %p203 = por %p201, %p202
      %p204 = scmp.ne.s32.totalorder %s193, %s194
      %p205 = scmp.eq.s32.totalorder %s20, 0
      %p206 = por %p204, %p205
      %p207 = scmp.ne.s32.totalorder %s193, %s194
      %p208 = scmp.eq.s32.totalorder %s21, 1
      %p209 = por %p207, %p208
      %p211 = scmp.ne.s32.totalorder %s194, %s210
      %p212 = scmp.eq.s32.totalorder %s21, 0
      %p213 = por %p211, %p212
      %p214 = scmp.le.s32.totalorder 1, %s15
      %p215 = scmp.lt.s32.totalorder %s15, 3
      %p216 = pnand %p214, %p215
      %p217 = pneg %p216
      // Predicated region
      $region9: #{tpu_custom_call.1} parent=5 // pred_check
        _
      $region10: #{tpu_custom_call.1} parent=5 // pred_check_branch
        %219 = sbr.rel (%p216) target = $region12
      $region11: #{tpu_custom_call.1} parent=5 // pred_region
        %s220 = ssub.s32 %s15, 1
        // Predicated region
        $region13: #{tpu_custom_call.1} parent=11 // pred_check
          %p221 = pneg %p146
        $region14: #{tpu_custom_call.1} parent=11 // pred_check_branch
          %223 = sbr.rel (%p221) target = $region16
        $region15: #{tpu_custom_call.1} parent=11 // pred_region
          %p224 = scmp.lt.s32.totalorder %s27, 0
          %s225 = scalar_select %p224, %s27, 0
          %s226 = smul.addr %s225, 4
          %s227 = scalar_lea.vmem %s3, %s226
        $region16: #{tpu_custom_call.1} parent=11 // pred_fallthru
          _
      $region12: #{tpu_custom_call.1} parent=5 // pred_fallthru
        _
      %p228 = scmp.lt.s32.totalorder %s15, 2
      // Predicated region
      $region17: #{tpu_custom_call.1} parent=5 // pred_check
        %p229 = pneg %p228
      $region18: #{tpu_custom_call.1} parent=5 // pred_check_branch
        %231 = sbr.rel (%p229) target = $region20
      $region19: #{tpu_custom_call.1} parent=5 // pred_region
        // Predicated region
        $region21: #{tpu_custom_call.1} parent=19 // pred_check
          %p232 = pneg %p58
        $region22: #{tpu_custom_call.1} parent=19 // pred_check_branch
          %234 = sbr.rel (%p232) target = $region24
        $region23: #{tpu_custom_call.1} parent=19 // pred_region
          %s235 = smul.u32 8, %s23
          %p236 = scmp.lt.s32.totalorder %s22, 1
          %s237 = scalar_select %p236, %s22, 1
          %p238 = scmp.lt.s32.totalorder %s235, 7
          %s239 = scalar_select %p238, %s235, 7
          %p240 = scmp.lt.s32.totalorder %s24, 0
          %s241 = scalar_select %p240, %s24, 0
          %s242 = sadd.s32 %s241, %s239
          %s243 = smul.addr %s237, 8
          %s244 = sadd.s32 %s242, %s243
          %s245 = smul.addr %s244, 8
          %s246 = scalar_lea.vmem %s0, %s245
          %s247 = smul.u32 8, %s23
        $region24: #{tpu_custom_call.1} parent=19 // pred_fallthru
          _
        // Predicated region
        $region25: #{tpu_custom_call.1} parent=19 // pred_check
          %p248 = pneg %p86
        $region26: #{tpu_custom_call.1} parent=19 // pred_check_branch
          %250 = sbr.rel (%p248) target = $region28
        $region27: #{tpu_custom_call.1} parent=19 // pred_region
          %s251 = smul.u32 8, %s23
          %p252 = scmp.lt.s32.totalorder %s22, 1
          %s253 = scalar_select %p252, %s22, 1
          %p254 = scmp.lt.s32.totalorder %s251, 7
          %s255 = scalar_select %p254, %s251, 7
          %s256 = smul.addr %s253, 8
          %s257 = sadd.s32 %s255, %s256
          %s258 = smul.addr %s257, 8
          %s259 = scalar_lea.vmem %s1, %s258
          %s260 = smul.u32 8, %s23
        $region28: #{tpu_custom_call.1} parent=19 // pred_fallthru
          _
        // Predicated region
        $region29: #{tpu_custom_call.1} parent=19 // pred_check
          %p261 = pneg %p114
        $region30: #{tpu_custom_call.1} parent=19 // pred_check_branch
          %263 = sbr.rel (%p261) target = $region32
        $region31: #{tpu_custom_call.1} parent=19 // pred_region
          %s264 = smul.u32 8, %s23
          %p265 = scmp.lt.s32.totalorder %s22, 1
          %s266 = scalar_select %p265, %s22, 1
          %p267 = scmp.lt.s32.totalorder %s264, 7
          %s268 = scalar_select %p267, %s264, 7
          %s269 = smul.addr %s266, 8
          %s270 = sadd.s32 %s268, %s269
          %s271 = smul.addr %s270, 8
          %s272 = scalar_lea.vmem %s2, %s271
          %s273 = smul.u32 8, %s23
        $region32: #{tpu_custom_call.1} parent=19 // pred_fallthru
          _
      $region20: #{tpu_custom_call.1} parent=5 // pred_fallthru
        _
      %p274 = scmp.le.s32.totalorder 1, %s15
      %p275 = scmp.lt.s32.totalorder %s15, 3
      %p276 = pnand %p274, %p275
      %p277 = pneg %p276
      // Predicated region
      $region33: #{tpu_custom_call.1} parent=5 // pred_check
        _
      $region34: #{tpu_custom_call.1} parent=5 // pred_check_branch
        %279 = sbr.rel (%p276) target = $region36
      $region35: #{tpu_custom_call.1} parent=5 // pred_region
        %s280 = ssub.s32 %s15, 1
        %s281 = smul.u32 8, %s26
        %p282 = scmp.lt.s32.totalorder %s25, 1
        %s283 = scalar_select %p282, %s25, 1
        %p284 = scmp.lt.s32.totalorder %s281, 7
        %s285 = scalar_select %p284, %s281, 7
        %p286 = scmp.lt.s32.totalorder %s27, 0
        %s287 = scalar_select %p286, %s27, 0
        %s288 = sadd.s32 %s287, %s285
        %s289 = smul.addr %s283, 8
        %s290 = sadd.s32 %s288, %s289
        %s291 = smul.addr %s290, 8
        %s292 = scalar_lea.vmem %s0, %s291
        %p293 = pneg %p64
        %p294 = pneg %p61
        %s295 = smul.u32 8, %s26
        %p296 = scmp.lt.s32.totalorder %s25, 1
        %s297 = scalar_select %p296, %s25, 1
        %p298 = scmp.lt.s32.totalorder %s295, 7
        %s299 = scalar_select %p298, %s295, 7
        %s300 = smul.addr %s297, 8
        %s301 = sadd.s32 %s299, %s300
        %s302 = smul.addr %s301, 8
        %s303 = scalar_lea.vmem %s1, %s302
        %p304 = pneg %p92
        %p305 = pneg %p89
        %s306 = smul.u32 8, %s26
        %p307 = scmp.lt.s32.totalorder %s25, 1
        %s308 = scalar_select %p307, %s25, 1
        %p309 = scmp.lt.s32.totalorder %s306, 7
        %s310 = scalar_select %p309, %s306, 7
        %s311 = smul.addr %s308, 8
        %s312 = sadd.s32 %s310, %s311
        %s313 = smul.addr %s312, 8
        %s314 = scalar_lea.vmem %s2, %s313
        %p315 = pneg %p120
        %p316 = pneg %p117
        %p317 = scmp.lt.s32.totalorder %s27, 0
        %s318 = scalar_select %p317, %s27, 0
        %s319 = smul.addr %s318, 4
        %s320 = scalar_lea.vmem %s3, %s319
        %p321 = pneg %p146
        %p322 = pneg %p143
        %p323 = pneg %p176
        %p324 = pneg %p173
        %s325 = smul.u32 8, %s26
        %p326 = scmp.lt.s32.totalorder %s25, 1
        %s327 = scalar_select %p326, %s25, 1
        %p328 = scmp.lt.s32.totalorder %s325, 7
        %s329 = scalar_select %p328, %s325, 7
        %p330 = scmp.lt.s32.totalorder %s27, 0
        %s331 = scalar_select %p330, %s27, 0
        %s332 = sadd.s32 %s331, %s329
        %s333 = smul.addr %s327, 8
        %s334 = sadd.s32 %s332, %s333
        %s335 = smul.addr %s334, 8
        %s336 = scalar_lea.vmem %s4, %s335
        %p337 = pneg %p206
        %p338 = pneg %p203
        %s339 = sand.u32 %s193, 1
        %s340 = scalar_lea.sflag [#allocation3], %s339
        %s341 = sand.u32 %s193, 1
        %s342 = smul.addr %s341, 64
        %s343 = scalar_lea.vmem [#allocation2], %s342
        %s344 = smul.u32 8, %s26
        %p345 = scmp.lt.s32.totalorder %s25, 1
        %s346 = scalar_select %p345, %s25, 1
        %p347 = scmp.lt.s32.totalorder %s344, 7
        %s348 = scalar_select %p347, %s344, 7
        %p349 = scmp.lt.s32.totalorder %s27, 0
        %s350 = scalar_select %p349, %s27, 0
        %s351 = sadd.s32 %s350, %s348
        %s352 = smul.addr %s346, 8
        %s353 = sadd.s32 %s351, %s352
        %s354 = smul.addr %s353, 8
        %s355 = scalar_lea.vmem %s0, %s354
        %s356 = smul.u32 8, %s26
        %s357 = smul.u32 8, %s26
        %p358 = scmp.lt.s32.totalorder %s25, 1
        %s359 = scalar_select %p358, %s25, 1
        %p360 = scmp.lt.s32.totalorder %s357, 7
        %s361 = scalar_select %p360, %s357, 7
        %s362 = smul.addr %s359, 8
        %s363 = sadd.s32 %s361, %s362
        %s364 = smul.addr %s363, 8
        %s365 = scalar_lea.vmem %s1, %s364
        %s366 = smul.u32 8, %s26
        %s367 = smul.u32 8, %s26
        %p368 = scmp.lt.s32.totalorder %s25, 1
        %s369 = scalar_select %p368, %s25, 1
        %p370 = scmp.lt.s32.totalorder %s367, 7
        %s371 = scalar_select %p370, %s367, 7
        %s372 = smul.addr %s369, 8
        %s373 = sadd.s32 %s371, %s372
        %s374 = smul.addr %s373, 8
        %s375 = scalar_lea.vmem %s2, %s374
        %s376 = smul.u32 8, %s26
        %p377 = scmp.lt.s32.totalorder %s27, 0
        %s378 = scalar_select %p377, %s27, 0
        %s379 = smul.addr %s378, 4
        %s380 = scalar_lea.vmem %s3, %s379
        %s381 = smul.u32 8, %s26
        %p382 = scmp.lt.s32.totalorder %s25, 1
        %s383 = scalar_select %p382, %s25, 1
        %p384 = scmp.lt.s32.totalorder %s381, 7
        %s385 = scalar_select %p384, %s381, 7
        %p386 = scmp.lt.s32.totalorder %s27, 0
        %s387 = scalar_select %p386, %s27, 0
        %s388 = sadd.s32 %s387, %s385
        %s389 = smul.addr %s383, 8
        %s390 = sadd.s32 %s388, %s389
        %s391 = smul.addr %s390, 8
        %s392 = scalar_lea.vmem %s4, %s391
        %s393 = smul.u32 8, %s26
        %s394 = smul.u32 8, %s26
        %v395 = vld [vmem:[%s355] sm:$0xff]
        %v396 = vld [vmem:[%s355 + $0x8] sm:$0xff]
        %v397 = vld [vmem:[%s355 + $0x10] sm:$0xff]
        %v398 = vld [vmem:[%s355 + $0x18] sm:$0xff]
        %v399 = vld [vmem:[%s355 + $0x20] sm:$0xff]
        %v400 = vld [vmem:[%s355 + $0x28] sm:$0xff]
        %v401 = vld [vmem:[%s355 + $0x30] sm:$0xff]
        %v402 = vld [vmem:[%s355 + $0x38] sm:$0xff]
        %v403 = vld [vmem:[%s365] sm:$0xff]
        %v404 = vld [vmem:[%s365 + $0x8] sm:$0xff]
        %v405 = vld [vmem:[%s365 + $0x10] sm:$0xff]
        %v406 = vld [vmem:[%s365 + $0x18] sm:$0xff]
        %v407 = vld [vmem:[%s365 + $0x20] sm:$0xff]
        %v408 = vld [vmem:[%s365 + $0x28] sm:$0xff]
        %v409 = vld [vmem:[%s365 + $0x30] sm:$0xff]
        %v410 = vld [vmem:[%s365 + $0x38] sm:$0xff]
        %v411 = vld [vmem:[%s375] sm:$0xff]
        %v412 = vld [vmem:[%s375 + $0x8] sm:$0xff]
        %v413 = vld [vmem:[%s375 + $0x10] sm:$0xff]
        %v414 = vld [vmem:[%s375 + $0x18] sm:$0xff]
        %v415 = vld [vmem:[%s375 + $0x20] sm:$0xff]
        %v416 = vld [vmem:[%s375 + $0x28] sm:$0xff]
        %v417 = vld [vmem:[%s375 + $0x30] sm:$0xff]
        %v418 = vld [vmem:[%s375 + $0x38] sm:$0xff]
        %vm419 = vcmask 31744
        %v421 = vsel %vm419, %v395, 0
        %v424 = vsel %vm419, %v403, 0
        %426 = vmatpush.xpose.msra.mxu0 0.0
        %427 = vmatpush.xpose.msra.mxu0 0.0
        %428 = vmatpush.xpose.msra.mxu0 0.0
        %429 = vmatpush.xpose.msra.mxu0 0.0
        %430 = vmatpush.xpose.msra.mxu0 0.0
        %431 = vmatpush.xpose.msra.mxu0 0.0
        %432 = vmatpush.xpose.msra.mxu0 0.0
        %433 = vmatpush.xpose.msra.mxu0 0.0
        %434 = vmatpush.xpose.msra.mxu0 0.0
        %435 = vmatpush.xpose.msra.mxu0 0.0
        %436 = vmatpush.xpose.msra.mxu0 0.0
        %437 = vmatpush.xpose.msra.mxu0 0.0
        %438 = vmatpush.xpose.msra.mxu0 0.0
        %439 = vmatpush.xpose.msra.mxu0 0.0
        %440 = vmatpush.xpose.msra.mxu0 0.0
        %441 = vmatpush.xpose.msra.mxu0 %v424
        %442 = vmatmul.f32.gmra.mxu0 %v421
        %v443 = vpop.f32.mrf.mxu0
        %v444 = vadd.f32 0.0, %v443
        %445 = vdwg.mxu0
        %v447 = vsel %vm419, %v396, 0
        %v450 = vsel %vm419, %v404, 0
        %452 = vmatpush.xpose.msra.mxu0 0.0
        %453 = vmatpush.xpose.msra.mxu0 0.0
        %454 = vmatpush.xpose.msra.mxu0 0.0
        %455 = vmatpush.xpose.msra.mxu0 0.0
        %456 = vmatpush.xpose.msra.mxu0 0.0
        %457 = vmatpush.xpose.msra.mxu0 0.0
        %458 = vmatpush.xpose.msra.mxu0 0.0
        %459 = vmatpush.xpose.msra.mxu0 0.0
        %460 = vmatpush.xpose.msra.mxu0 0.0
        %461 = vmatpush.xpose.msra.mxu0 0.0
        %462 = vmatpush.xpose.msra.mxu0 0.0
        %463 = vmatpush.xpose.msra.mxu0 0.0
        %464 = vmatpush.xpose.msra.mxu0 0.0
        %465 = vmatpush.xpose.msra.mxu0 0.0
        %466 = vmatpush.xpose.msra.mxu0 0.0
        %467 = vmatpush.xpose.msra.mxu0 %v450
        %468 = vmatmul.f32.gmra.mxu0 %v447
        %v469 = vpop.f32.mrf.mxu0
        %v470 = vadd.f32 0.0, %v469
        %471 = vdwg.mxu0
        %v473 = vsel %vm419, %v397, 0
        %v476 = vsel %vm419, %v405, 0
        %478 = vmatpush.xpose.msra.mxu0 0.0
        %479 = vmatpush.xpose.msra.mxu0 0.0
        %480 = vmatpush.xpose.msra.mxu0 0.0
        %481 = vmatpush.xpose.msra.mxu0 0.0
        %482 = vmatpush.xpose.msra.mxu0 0.0
        %483 = vmatpush.xpose.msra.mxu0 0.0
        %484 = vmatpush.xpose.msra.mxu0 0.0
        %485 = vmatpush.xpose.msra.mxu0 0.0
        %486 = vmatpush.xpose.msra.mxu0 0.0
        %487 = vmatpush.xpose.msra.mxu0 0.0
        %488 = vmatpush.xpose.msra.mxu0 0.0
        %489 = vmatpush.xpose.msra.mxu0 0.0
        %490 = vmatpush.xpose.msra.mxu0 0.0
        %491 = vmatpush.xpose.msra.mxu0 0.0
        %492 = vmatpush.xpose.msra.mxu0 0.0
        %493 = vmatpush.xpose.msra.mxu0 %v476
        %494 = vmatmul.f32.gmra.mxu0 %v473
        %v495 = vpop.f32.mrf.mxu0
        %v496 = vadd.f32 0.0, %v495
        %497 = vdwg.mxu0
        %v499 = vsel %vm419, %v398, 0
        %v502 = vsel %vm419, %v406, 0
        %504 = vmatpush.xpose.msra.mxu0 0.0
        %505 = vmatpush.xpose.msra.mxu0 0.0
        %506 = vmatpush.xpose.msra.mxu0 0.0
        %507 = vmatpush.xpose.msra.mxu0 0.0
        %508 = vmatpush.xpose.msra.mxu0 0.0
        %509 = vmatpush.xpose.msra.mxu0 0.0
        %510 = vmatpush.xpose.msra.mxu0 0.0
        %511 = vmatpush.xpose.msra.mxu0 0.0
        %512 = vmatpush.xpose.msra.mxu0 0.0
        %513 = vmatpush.xpose.msra.mxu0 0.0
        %514 = vmatpush.xpose.msra.mxu0 0.0
        %515 = vmatpush.xpose.msra.mxu0 0.0
        %516 = vmatpush.xpose.msra.mxu0 0.0
        %517 = vmatpush.xpose.msra.mxu0 0.0
        %518 = vmatpush.xpose.msra.mxu0 0.0
        %519 = vmatpush.xpose.msra.mxu0 %v502
        %520 = vmatmul.f32.gmra.mxu0 %v499
        %v521 = vpop.f32.mrf.mxu0
        %v522 = vadd.f32 0.0, %v521
        %523 = vdwg.mxu0
        %v525 = vsel %vm419, %v399, 0
        %v528 = vsel %vm419, %v407, 0
        %530 = vmatpush.xpose.msra.mxu0 0.0
        %531 = vmatpush.xpose.msra.mxu0 0.0
        %532 = vmatpush.xpose.msra.mxu0 0.0
        %533 = vmatpush.xpose.msra.mxu0 0.0
        %534 = vmatpush.xpose.msra.mxu0 0.0
        %535 = vmatpush.xpose.msra.mxu0 0.0
        %536 = vmatpush.xpose.msra.mxu0 0.0
        %537 = vmatpush.xpose.msra.mxu0 0.0
        %538 = vmatpush.xpose.msra.mxu0 0.0
        %539 = vmatpush.xpose.msra.mxu0 0.0
        %540 = vmatpush.xpose.msra.mxu0 0.0
        %541 = vmatpush.xpose.msra.mxu0 0.0
        %542 = vmatpush.xpose.msra.mxu0 0.0
        %543 = vmatpush.xpose.msra.mxu0 0.0
        %544 = vmatpush.xpose.msra.mxu0 0.0
        %545 = vmatpush.xpose.msra.mxu0 %v528
        %546 = vmatmul.f32.gmra.mxu0 %v525
        %v547 = vpop.f32.mrf.mxu0
        %v548 = vadd.f32 0.0, %v547
        %549 = vdwg.mxu0
        %v551 = vsel %vm419, %v400, 0
        %v554 = vsel %vm419, %v408, 0
        %556 = vmatpush.xpose.msra.mxu0 0.0
        %557 = vmatpush.xpose.msra.mxu0 0.0
        %558 = vmatpush.xpose.msra.mxu0 0.0
        %559 = vmatpush.xpose.msra.mxu0 0.0
        %560 = vmatpush.xpose.msra.mxu0 0.0
        %561 = vmatpush.xpose.msra.mxu0 0.0
        %562 = vmatpush.xpose.msra.mxu0 0.0
        %563 = vmatpush.xpose.msra.mxu0 0.0
        %564 = vmatpush.xpose.msra.mxu0 0.0
        %565 = vmatpush.xpose.msra.mxu0 0.0
        %566 = vmatpush.xpose.msra.mxu0 0.0
        %567 = vmatpush.xpose.msra.mxu0 0.0
        %568 = vmatpush.xpose.msra.mxu0 0.0
        %569 = vmatpush.xpose.msra.mxu0 0.0
        %570 = vmatpush.xpose.msra.mxu0 0.0
        %571 = vmatpush.xpose.msra.mxu0 %v554
        %572 = vmatmul.f32.gmra.mxu0 %v551
        %v573 = vpop.f32.mrf.mxu0
        %v574 = vadd.f32 0.0, %v573
        %575 = vdwg.mxu0
        %v577 = vsel %vm419, %v401, 0
        %v580 = vsel %vm419, %v409, 0
        %582 = vmatpush.xpose.msra.mxu0 0.0
        %583 = vmatpush.xpose.msra.mxu0 0.0
        %584 = vmatpush.xpose.msra.mxu0 0.0
        %585 = vmatpush.xpose.msra.mxu0 0.0
        %586 = vmatpush.xpose.msra.mxu0 0.0
        %587 = vmatpush.xpose.msra.mxu0 0.0
        %588 = vmatpush.xpose.msra.mxu0 0.0
        %589 = vmatpush.xpose.msra.mxu0 0.0
        %590 = vmatpush.xpose.msra.mxu0 0.0
        %591 = vmatpush.xpose.msra.mxu0 0.0
        %592 = vmatpush.xpose.msra.mxu0 0.0
        %593 = vmatpush.xpose.msra.mxu0 0.0
        %594 = vmatpush.xpose.msra.mxu0 0.0
        %595 = vmatpush.xpose.msra.mxu0 0.0
        %596 = vmatpush.xpose.msra.mxu0 0.0
        %597 = vmatpush.xpose.msra.mxu0 %v580
        %598 = vmatmul.f32.gmra.mxu0 %v577
        %v599 = vpop.f32.mrf.mxu0
        %v600 = vadd.f32 0.0, %v599
        %601 = vdwg.mxu0
        %v603 = vsel %vm419, %v402, 0
        %v606 = vsel %vm419, %v410, 0
        %608 = vmatpush.xpose.msra.mxu0 0.0
        %609 = vmatpush.xpose.msra.mxu0 0.0
        %610 = vmatpush.xpose.msra.mxu0 0.0
        %611 = vmatpush.xpose.msra.mxu0 0.0
        %612 = vmatpush.xpose.msra.mxu0 0.0
        %613 = vmatpush.xpose.msra.mxu0 0.0
        %614 = vmatpush.xpose.msra.mxu0 0.0
        %615 = vmatpush.xpose.msra.mxu0 0.0
        %616 = vmatpush.xpose.msra.mxu0 0.0
        %617 = vmatpush.xpose.msra.mxu0 0.0
        %618 = vmatpush.xpose.msra.mxu0 0.0
        %619 = vmatpush.xpose.msra.mxu0 0.0
        %620 = vmatpush.xpose.msra.mxu0 0.0
        %621 = vmatpush.xpose.msra.mxu0 0.0
        %622 = vmatpush.xpose.msra.mxu0 0.0
        %623 = vmatpush.xpose.msra.mxu0 %v606
        %624 = vmatmul.f32.gmra.mxu0 %v603
        %v625 = vpop.f32.mrf.mxu0
        %v626 = vadd.f32 0.0, %v625
        %627 = vdwg.mxu0
        %v628 = vmul.f32 %v444, 0.5
        %v629 = vmul.f32 %v470, 0.5
        %v630 = vmul.f32 %v496, 0.5
        %v631 = vmul.f32 %v522, 0.5
        %v632 = vmul.f32 %v548, 0.5
        %v633 = vmul.f32 %v574, 0.5
        %v634 = vmul.f32 %v600, 0.5
        %v635 = vmul.f32 %v626, 0.5
        %v636 = vld [vmem:[%s380] sm:$0xf]
        %v637 = vunpack.c.l.bf16 %v636
        %v638 = vadd.f32 %v628, %v637
        %v639 = vadd.f32 %v629, %v637
        %v640 = vadd.f32 %v630, %v637
        %v641 = vadd.f32 %v631, %v637
        %v642 = vadd.f32 %v632, %v637
        %v643 = vadd.f32 %v633, %v637
        %v644 = vadd.f32 %v634, %v637
        %v645 = vadd.f32 %v635, %v637
        %vm646 = vcmask 64512
        %v647 = vsel %vm646, %v638, -inf
        %648 = vmax.xlane.f32.xlu0 %v647
        %v649 = vpop.xlane.xlu0 %648
        %v650 = vsel %vm646, %v639, -inf
        %651 = vmax.xlane.f32.xlu0 %v650
        %v652 = vpop.xlane.xlu0 %651
        %v653 = vsel %vm646, %v640, -inf
        %654 = vmax.xlane.f32.xlu0 %v653
        %v655 = vpop.xlane.xlu0 %654
        %v656 = vsel %vm646, %v641, -inf
        %657 = vmax.xlane.f32.xlu0 %v656
        %v658 = vpop.xlane.xlu0 %657
        %v659 = vsel %vm646, %v642, -inf
        %660 = vmax.xlane.f32.xlu0 %v659
        %v661 = vpop.xlane.xlu0 %660
        %v662 = vsel %vm646, %v643, -inf
        %663 = vmax.xlane.f32.xlu0 %v662
        %v664 = vpop.xlane.xlu0 %663
        %v665 = vsel %vm646, %v644, -inf
        %666 = vmax.xlane.f32.xlu0 %v665
        %v667 = vpop.xlane.xlu0 %666
        %v668 = vsel %vm646, %v645, -inf
        %669 = vmax.xlane.f32.xlu0 %v668
        %v670 = vpop.xlane.xlu0 %669
        %vm671 = vcmp.eq.f32.partialorder %v649, -inf
        %vm672 = vcmp.eq.f32.partialorder %v652, -inf
        %vm673 = vcmp.eq.f32.partialorder %v655, -inf
        %vm674 = vcmp.eq.f32.partialorder %v658, -inf
        %vm675 = vcmp.eq.f32.partialorder %v661, -inf
        %vm676 = vcmp.eq.f32.partialorder %v664, -inf
        %vm677 = vcmp.eq.f32.partialorder %v667, -inf
        %vm678 = vcmp.eq.f32.partialorder %v670, -inf
        %v679 = vsel %vm671, 0.0, %v649
        %v680 = vsel %vm672, 0.0, %v652
        %v681 = vsel %vm673, 0.0, %v655
        %v682 = vsel %vm674, 0.0, %v658
        %v683 = vsel %vm675, 0.0, %v661
        %v684 = vsel %vm676, 0.0, %v664
        %v685 = vsel %vm677, 0.0, %v667
        %v686 = vsel %vm678, 0.0, %v670
        %v687 = vsub.f32 %v638, %v679
        %v688 = vsub.f32 %v639, %v680
        %v689 = vsub.f32 %v640, %v681
        %v690 = vsub.f32 %v641, %v682
        %v691 = vsub.f32 %v642, %v683
        %v692 = vsub.f32 %v643, %v684
        %v693 = vsub.f32 %v644, %v685
        %v694 = vsub.f32 %v645, %v686
        %v695 = vmul.f32 %v687, 1.442695
        %v696 = vpow.pop %v695
        %v697 = vmul.f32 %v688, 1.442695
        %v698 = vpow.pop %v697
        %v699 = vmul.f32 %v689, 1.442695
        %v700 = vpow.pop %v699
        %v701 = vmul.f32 %v690, 1.442695
        %v702 = vpow.pop %v701
        %v703 = vmul.f32 %v691, 1.442695
        %v704 = vpow.pop %v703
        %v705 = vmul.f32 %v692, 1.442695
        %v706 = vpow.pop %v705
        %v707 = vmul.f32 %v693, 1.442695
        %v708 = vpow.pop %v707
        %v709 = vmul.f32 %v694, 1.442695
        %v710 = vpow.pop %v709
        %v711 = vsel %vm646, %v696, 0.0
        %712 = vadd.xlane.f32.xlu0 %v711
        %v713 = vpop.xlane.xlu0 %712
        %v714 = vsel %vm646, %v698, 0.0
        %715 = vadd.xlane.f32.xlu0 %v714
        %v716 = vpop.xlane.xlu0 %715
        %v717 = vsel %vm646, %v700, 0.0
        %718 = vadd.xlane.f32.xlu0 %v717
        %v719 = vpop.xlane.xlu0 %718
        %v720 = vsel %vm646, %v702, 0.0
        %721 = vadd.xlane.f32.xlu0 %v720
        %v722 = vpop.xlane.xlu0 %721
        %v723 = vsel %vm646, %v704, 0.0
        %724 = vadd.xlane.f32.xlu0 %v723
        %v725 = vpop.xlane.xlu0 %724
        %v726 = vsel %vm646, %v706, 0.0
        %727 = vadd.xlane.f32.xlu0 %v726
        %v728 = vpop.xlane.xlu0 %727
        %v729 = vsel %vm646, %v708, 0.0
        %730 = vadd.xlane.f32.xlu0 %v729
        %v731 = vpop.xlane.xlu0 %730
        %v732 = vsel %vm646, %v710, 0.0
        %733 = vadd.xlane.f32.xlu0 %v732
        %v734 = vpop.xlane.xlu0 %733
        %v735 = vrcp.pop %v713
        %v736 = vmul.f32 %v713, %v735
        %v737 = vsub.f32 1.0, %v736
        %v738 = vmul.f32 %v735, %v737
        %v739 = vadd.f32 %v735, %v738
        %vm740 = vweird.f32 %v713
        %vm741 = vweird.f32 %v735
        %vm742 = vmor %vm740, %vm741
        %v743 = vsel %vm742, %v735, %v739
        %v744 = vand.u32 2147483647, %v713
        %vm745 = vcmp.eq.f32.partialorder %v744, 8.507059e+37
        %v746 = vand.u32 %v713, 2147483648
        %v747 = vor.u32 1.1754944e-38, %v746
        %v748 = vsel %vm745, %v747, %v743
        %v749 = vmul.f32 %v696, %v748
        %v750 = vrcp.pop %v716
        %v751 = vmul.f32 %v716, %v750
        %v752 = vsub.f32 1.0, %v751
        %v753 = vmul.f32 %v750, %v752
        %v754 = vadd.f32 %v750, %v753
        %vm755 = vweird.f32 %v716
        %vm756 = vweird.f32 %v750
        %vm757 = vmor %vm755, %vm756
        %v758 = vsel %vm757, %v750, %v754
        %v759 = vand.u32 2147483647, %v716
        %vm760 = vcmp.eq.f32.partialorder %v759, 8.507059e+37
        %v761 = vand.u32 %v716, 2147483648
        %v762 = vor.u32 1.1754944e-38, %v761
        %v763 = vsel %vm760, %v762, %v758
        %v764 = vmul.f32 %v698, %v763
        %v765 = vrcp.pop %v719
        %v766 = vmul.f32 %v719, %v765
        %v767 = vsub.f32 1.0, %v766
        %v768 = vmul.f32 %v765, %v767
        %v769 = vadd.f32 %v765, %v768
        %vm770 = vweird.f32 %v719
        %vm771 = vweird.f32 %v765
        %vm772 = vmor %vm770, %vm771
        %v773 = vsel %vm772, %v765, %v769
        %v774 = vand.u32 2147483647, %v719
        %vm775 = vcmp.eq.f32.partialorder %v774, 8.507059e+37
        %v776 = vand.u32 %v719, 2147483648
        %v777 = vor.u32 1.1754944e-38, %v776
        %v778 = vsel %vm775, %v777, %v773
        %v779 = vmul.f32 %v700, %v778
        %v780 = vrcp.pop %v722
        %v781 = vmul.f32 %v722, %v780
        %v782 = vsub.f32 1.0, %v781
        %v783 = vmul.f32 %v780, %v782
        %v784 = vadd.f32 %v780, %v783
        %vm785 = vweird.f32 %v722
        %vm786 = vweird.f32 %v780
        %vm787 = vmor %vm785, %vm786
        %v788 = vsel %vm787, %v780, %v784
        %v789 = vand.u32 2147483647, %v722
        %vm790 = vcmp.eq.f32.partialorder %v789, 8.507059e+37
        %v791 = vand.u32 %v722, 2147483648
        %v792 = vor.u32 1.1754944e-38, %v791
        %v793 = vsel %vm790, %v792, %v788
        %v794 = vmul.f32 %v702, %v793
        %v795 = vrcp.pop %v725
        %v796 = vmul.f32 %v725, %v795
        %v797 = vsub.f32 1.0, %v796
        %v798 = vmul.f32 %v795, %v797
        %v799 = vadd.f32 %v795, %v798
        %vm800 = vweird.f32 %v725
        %vm801 = vweird.f32 %v795
        %vm802 = vmor %vm800, %vm801
        %v803 = vsel %vm802, %v795, %v799
        %v804 = vand.u32 2147483647, %v725
        %vm805 = vcmp.eq.f32.partialorder %v804, 8.507059e+37
        %v806 = vand.u32 %v725, 2147483648
        %v807 = vor.u32 1.1754944e-38, %v806
        %v808 = vsel %vm805, %v807, %v803
        %v809 = vmul.f32 %v704, %v808
        %v810 = vrcp.pop %v728
        %v811 = vmul.f32 %v728, %v810
        %v812 = vsub.f32 1.0, %v811
        %v813 = vmul.f32 %v810, %v812
        %v814 = vadd.f32 %v810, %v813
        %vm815 = vweird.f32 %v728
        %vm816 = vweird.f32 %v810
        %vm817 = vmor %vm815, %vm816
        %v818 = vsel %vm817, %v810, %v814
        %v819 = vand.u32 2147483647, %v728
        %vm820 = vcmp.eq.f32.partialorder %v819, 8.507059e+37
        %v821 = vand.u32 %v728, 2147483648
        %v822 = vor.u32 1.1754944e-38, %v821
        %v823 = vsel %vm820, %v822, %v818
        %v824 = vmul.f32 %v706, %v823
        %v825 = vrcp.pop %v731
        %v826 = vmul.f32 %v731, %v825
        %v827 = vsub.f32 1.0, %v826
        %v828 = vmul.f32 %v825, %v827
        %v829 = vadd.f32 %v825, %v828
        %vm830 = vweird.f32 %v731
        %vm831 = vweird.f32 %v825
        %vm832 = vmor %vm830, %vm831
        %v833 = vsel %vm832, %v825, %v829
        %v834 = vand.u32 2147483647, %v731
        %vm835 = vcmp.eq.f32.partialorder %v834, 8.507059e+37
        %v836 = vand.u32 %v731, 2147483648
        %v837 = vor.u32 1.1754944e-38, %v836
        %v838 = vsel %vm835, %v837, %v833
        %v839 = vmul.f32 %v708, %v838
        %v840 = vrcp.pop %v734
        %v841 = vmul.f32 %v734, %v840
        %v842 = vsub.f32 1.0, %v841
        %v843 = vmul.f32 %v840, %v842
        %v844 = vadd.f32 %v840, %v843
        %vm845 = vweird.f32 %v734
        %vm846 = vweird.f32 %v840
        %vm847 = vmor %vm845, %vm846
        %v848 = vsel %vm847, %v840, %v844
        %v849 = vand.u32 2147483647, %v734
        %vm850 = vcmp.eq.f32.partialorder %v849, 8.507059e+37
        %v851 = vand.u32 %v734, 2147483648
        %v852 = vor.u32 1.1754944e-38, %v851
        %v853 = vsel %vm850, %v852, %v848
        %v854 = vmul.f32 %v710, %v853
        %855 = vst.msk [vmem:[%s343] sm:$0xff] %vm646, %v749
        %856 = vst.msk [vmem:[%s343 + $0x8] sm:$0xff] %vm646, %v764
        %857 = vst.msk [vmem:[%s343 + $0x10] sm:$0xff] %vm646, %v779
        %858 = vst.msk [vmem:[%s343 + $0x18] sm:$0xff] %vm646, %v794
        %859 = vst.msk [vmem:[%s343 + $0x20] sm:$0xff] %vm646, %v809
        %860 = vst.msk [vmem:[%s343 + $0x28] sm:$0xff] %vm646, %v824
        %861 = vst.msk [vmem:[%s343 + $0x30] sm:$0xff] %vm646, %v839
        %862 = vst.msk [vmem:[%s343 + $0x38] sm:$0xff] %vm646, %v854
        %v864 = vsel %vm646, %v749, 0
        %866 = vmatpush.msra.mxu0 0.0
        %867 = vmatpush.msra.mxu0 0.0
        %868 = vmatpush.msra.mxu0 0.0
        %869 = vmatpush.msra.mxu0 0.0
        %870 = vmatpush.msra.mxu0 0.0
        %871 = vmatpush.msra.mxu0 0.0
        %872 = vmatpush.msra.mxu0 0.0
        %873 = vmatpush.msra.mxu0 0.0
        %874 = vmatpush.msra.mxu0 0.0
        %875 = vmatpush.msra.mxu0 0.0
        %876 = vmatpush.msra.mxu0 0.0
        %877 = vmatpush.msra.mxu0 0.0
        %878 = vmatpush.msra.mxu0 0.0
        %879 = vmatpush.msra.mxu0 0.0
        %880 = vmatpush.msra.mxu0 0.0
        %881 = vmatpush.msra.mxu0 %v411
        %882 = vmatmul.f32.gmra.mxu0 %v864
        %v883 = vpop.f32.mrf.mxu0
        %v884 = vadd.f32 0.0, %v883
        %885 = vdwg.mxu0
        %v887 = vsel %vm646, %v764, 0
        %889 = vmatpush.msra.mxu0 0.0
        %890 = vmatpush.msra.mxu0 0.0
        %891 = vmatpush.msra.mxu0 0.0
        %892 = vmatpush.msra.mxu0 0.0
        %893 = vmatpush.msra.mxu0 0.0
        %894 = vmatpush.msra.mxu0 0.0
        %895 = vmatpush.msra.mxu0 0.0
        %896 = vmatpush.msra.mxu0 0.0
        %897 = vmatpush.msra.mxu0 0.0
        %898 = vmatpush.msra.mxu0 0.0
        %899 = vmatpush.msra.mxu0 0.0
        %900 = vmatpush.msra.mxu0 0.0
        %901 = vmatpush.msra.mxu0 0.0
        %902 = vmatpush.msra.mxu0 0.0
        %903 = vmatpush.msra.mxu0 0.0
        %904 = vmatpush.msra.mxu0 %v412
        %905 = vmatmul.f32.gmra.mxu0 %v887
        %v906 = vpop.f32.mrf.mxu0
        %v907 = vadd.f32 0.0, %v906
        %908 = vdwg.mxu0
        %v910 = vsel %vm646, %v779, 0
        %912 = vmatpush.msra.mxu0 0.0
        %913 = vmatpush.msra.mxu0 0.0
        %914 = vmatpush.msra.mxu0 0.0
        %915 = vmatpush.msra.mxu0 0.0
        %916 = vmatpush.msra.mxu0 0.0
        %917 = vmatpush.msra.mxu0 0.0
        %918 = vmatpush.msra.mxu0 0.0
        %919 = vmatpush.msra.mxu0 0.0
        %920 = vmatpush.msra.mxu0 0.0
        %921 = vmatpush.msra.mxu0 0.0
        %922 = vmatpush.msra.mxu0 0.0
        %923 = vmatpush.msra.mxu0 0.0
        %924 = vmatpush.msra.mxu0 0.0
        %925 = vmatpush.msra.mxu0 0.0
        %926 = vmatpush.msra.mxu0 0.0
        %927 = vmatpush.msra.mxu0 %v413
        %928 = vmatmul.f32.gmra.mxu0 %v910
        %v929 = vpop.f32.mrf.mxu0
        %v930 = vadd.f32 0.0, %v929
        %931 = vdwg.mxu0
        %v933 = vsel %vm646, %v794, 0
        %935 = vmatpush.msra.mxu0 0.0
        %936 = vmatpush.msra.mxu0 0.0
        %937 = vmatpush.msra.mxu0 0.0
        %938 = vmatpush.msra.mxu0 0.0
        %939 = vmatpush.msra.mxu0 0.0
        %940 = vmatpush.msra.mxu0 0.0
        %941 = vmatpush.msra.mxu0 0.0
        %942 = vmatpush.msra.mxu0 0.0
        %943 = vmatpush.msra.mxu0 0.0
        %944 = vmatpush.msra.mxu0 0.0
        %945 = vmatpush.msra.mxu0 0.0
        %946 = vmatpush.msra.mxu0 0.0
        %947 = vmatpush.msra.mxu0 0.0
        %948 = vmatpush.msra.mxu0 0.0
        %949 = vmatpush.msra.mxu0 0.0
        %950 = vmatpush.msra.mxu0 %v414
        %951 = vmatmul.f32.gmra.mxu0 %v933
        %v952 = vpop.f32.mrf.mxu0
        %v953 = vadd.f32 0.0, %v952
        %954 = vdwg.mxu0
        %v956 = vsel %vm646, %v809, 0
        %958 = vmatpush.msra.mxu0 0.0
        %959 = vmatpush.msra.mxu0 0.0
        %960 = vmatpush.msra.mxu0 0.0
        %961 = vmatpush.msra.mxu0 0.0
        %962 = vmatpush.msra.mxu0 0.0
        %963 = vmatpush.msra.mxu0 0.0
        %964 = vmatpush.msra.mxu0 0.0
        %965 = vmatpush.msra.mxu0 0.0
        %966 = vmatpush.msra.mxu0 0.0
        %967 = vmatpush.msra.mxu0 0.0
        %968 = vmatpush.msra.mxu0 0.0
        %969 = vmatpush.msra.mxu0 0.0
        %970 = vmatpush.msra.mxu0 0.0
        %971 = vmatpush.msra.mxu0 0.0
        %972 = vmatpush.msra.mxu0 0.0
        %973 = vmatpush.msra.mxu0 %v415
        %974 = vmatmul.f32.gmra.mxu0 %v956
        %v975 = vpop.f32.mrf.mxu0
        %v976 = vadd.f32 0.0, %v975
        %977 = vdwg.mxu0
        %v979 = vsel %vm646, %v824, 0
        %981 = vmatpush.msra.mxu0 0.0
        %982 = vmatpush.msra.mxu0 0.0
        %983 = vmatpush.msra.mxu0 0.0
        %984 = vmatpush.msra.mxu0 0.0
        %985 = vmatpush.msra.mxu0 0.0
        %986 = vmatpush.msra.mxu0 0.0
        %987 = vmatpush.msra.mxu0 0.0
        %988 = vmatpush.msra.mxu0 0.0
        %989 = vmatpush.msra.mxu0 0.0
        %990 = vmatpush.msra.mxu0 0.0
        %991 = vmatpush.msra.mxu0 0.0
        %992 = vmatpush.msra.mxu0 0.0
        %993 = vmatpush.msra.mxu0 0.0
        %994 = vmatpush.msra.mxu0 0.0
        %995 = vmatpush.msra.mxu0 0.0
        %996 = vmatpush.msra.mxu0 %v416
        %997 = vmatmul.f32.gmra.mxu0 %v979
        %v998 = vpop.f32.mrf.mxu0
        %v999 = vadd.f32 0.0, %v998
        %1000 = vdwg.mxu0
        %v1002 = vsel %vm646, %v839, 0
        %1004 = vmatpush.msra.mxu0 0.0
        %1005 = vmatpush.msra.mxu0 0.0
        %1006 = vmatpush.msra.mxu0 0.0
        %1007 = vmatpush.msra.mxu0 0.0
        %1008 = vmatpush.msra.mxu0 0.0
        %1009 = vmatpush.msra.mxu0 0.0
        %1010 = vmatpush.msra.mxu0 0.0
        %1011 = vmatpush.msra.mxu0 0.0
        %1012 = vmatpush.msra.mxu0 0.0
        %1013 = vmatpush.msra.mxu0 0.0
        %1014 = vmatpush.msra.mxu0 0.0
        %1015 = vmatpush.msra.mxu0 0.0
        %1016 = vmatpush.msra.mxu0 0.0
        %1017 = vmatpush.msra.mxu0 0.0
        %1018 = vmatpush.msra.mxu0 0.0
        %1019 = vmatpush.msra.mxu0 %v417
        %1020 = vmatmul.f32.gmra.mxu0 %v1002
        %v1021 = vpop.f32.mrf.mxu0
        %v1022 = vadd.f32 0.0, %v1021
        %1023 = vdwg.mxu0
        %v1025 = vsel %vm646, %v854, 0
        %1027 = vmatpush.msra.mxu0 0.0
        %1028 = vmatpush.msra.mxu0 0.0
        %1029 = vmatpush.msra.mxu0 0.0
        %1030 = vmatpush.msra.mxu0 0.0
        %1031 = vmatpush.msra.mxu0 0.0
        %1032 = vmatpush.msra.mxu0 0.0
        %1033 = vmatpush.msra.mxu0 0.0
        %1034 = vmatpush.msra.mxu0 0.0
        %1035 = vmatpush.msra.mxu0 0.0
        %1036 = vmatpush.msra.mxu0 0.0
        %1037 = vmatpush.msra.mxu0 0.0
        %1038 = vmatpush.msra.mxu0 0.0
        %1039 = vmatpush.msra.mxu0 0.0
        %1040 = vmatpush.msra.mxu0 0.0
        %1041 = vmatpush.msra.mxu0 0.0
        %1042 = vmatpush.msra.mxu0 %v418
        %1043 = vmatmul.f32.gmra.mxu0 %v1025
        %v1044 = vpop.f32.mrf.mxu0
        %v1045 = vadd.f32 0.0, %v1044
        %1046 = vdwg.mxu0
        %1047 = vst.msk [vmem:[%s392] sm:$0xff] %vm419, %v884
        %1048 = vst.msk [vmem:[%s392 + $0x8] sm:$0xff] %vm419, %v907
        %1049 = vst.msk [vmem:[%s392 + $0x10] sm:$0xff] %vm419, %v930
        %1050 = vst.msk [vmem:[%s392 + $0x18] sm:$0xff] %vm419, %v953
        %1051 = vst.msk [vmem:[%s392 + $0x20] sm:$0xff] %vm419, %v976
        %1052 = vst.msk [vmem:[%s392 + $0x28] sm:$0xff] %vm419, %v999
        %1053 = vst.msk [vmem:[%s392 + $0x30] sm:$0xff] %vm419, %v1022
        %1054 = vst.msk [vmem:[%s392 + $0x38] sm:$0xff] %vm419, %v1045
        %s1055 = smul.u32 8, %s26
        %p1056 = scmp.lt.s32.totalorder %s25, 1
        %s1057 = scalar_select %p1056, %s25, 1
        %p1058 = scmp.lt.s32.totalorder %s1055, 7
        %s1059 = scalar_select %p1058, %s1055, 7
        %p1060 = scmp.lt.s32.totalorder %s27, 0
        %s1061 = scalar_select %p1060, %s27, 0
        %s1062 = sadd.s32 %s1061, %s1059
        %s1063 = smul.addr %s1057, 8
        %s1064 = sadd.s32 %s1062, %s1063
        %s1065 = smul.addr %s1064, 8
        %s1066 = scalar_lea.vmem %s4, %s1065
        %s1067 = sand.u32 %s193, 1
        %s1068 = scalar_lea.sflag [#allocation3], %s1067
        %s1069 = sand.u32 %s193, 1
        %s1070 = smul.addr %s1069, 64
        %s1071 = scalar_lea.vmem [#allocation2], %s1070
        // Predicated region
        $region37: #{tpu_custom_call.1} parent=35 // pred_check
          %p1072 = pneg %p173
        $region38: #{tpu_custom_call.1} parent=35 // pred_check_branch
          %1074 = sbr.rel (%p1072) target = $region40
        $region39: #{tpu_custom_call.1} parent=35 // pred_region
          %s1075 = smul.u32 8, %s26
        $region40: #{tpu_custom_call.1} parent=35 // pred_fallthru
          _
        // Predicated region
        $region41: #{tpu_custom_call.1} parent=35 // pred_check
          %p1076 = pneg %p203
        $region42: #{tpu_custom_call.1} parent=35 // pred_check_branch
          %1078 = sbr.rel (%p1076) target = $region44
        $region43: #{tpu_custom_call.1} parent=35 // pred_region
          %s1079 = smul.u32 8, %s26
          %1081 = vsyncadd %s1068, 0
          %s1082 = sadd.s32 %s27, %s1079
          %s1083 = smul.addr %s25, 8
          %s1084 = sadd.s32 %s1082, %s1083
          %s1085 = smul.addr %s1084, 8
          %s1086 = scalar_lea.hbm %s5, %s1085
          %s1087 = sshll.u32 %s1071, 4
          %s1088 = int_to_ptr.vmem [resolvable:$true] %s1087
          %s1089 = sshll.u32 %s1086, 4
          %s1090 = int_to_ptr.hbm [resolvable:$true] %s1089
          %1095 = dma.vmem_to_hbm [thread:$0]  %s1088, 1024, %s1090, %s1068, 128, 128, 8
        $region44: #{tpu_custom_call.1} parent=35 // pred_fallthru
          _
      $region36: #{tpu_custom_call.1} parent=5 // pred_fallthru
        _
      %p1096 = scmp.le.s32.totalorder 2, %s15
      // Predicated region
      $region45: #{tpu_custom_call.1} parent=5 // pred_check
        %p1097 = pneg %p1096
      $region46: #{tpu_custom_call.1} parent=5 // pred_check_branch
        %1099 = sbr.rel (%p1097) target = $region48
      $region47: #{tpu_custom_call.1} parent=5 // pred_region
        %s1100 = ssub.s32 %s15, 2
        // Predicated region
        $region49: #{tpu_custom_call.1} parent=47 // pred_check
          %p1101 = pneg %p179
        $region50: #{tpu_custom_call.1} parent=47 // pred_check_branch
          %1103 = sbr.rel (%p1101) target = $region52
        $region51: #{tpu_custom_call.1} parent=47 // pred_region
          %s1104 = smul.u32 8, %s29
          %p1105 = scmp.lt.s32.totalorder %s28, 1
          %s1106 = scalar_select %p1105, %s28, 1
          %p1107 = scmp.lt.s32.totalorder %s1104, 7
          %s1108 = scalar_select %p1107, %s1104, 7
          %p1109 = scmp.lt.s32.totalorder %s30, 0
          %s1110 = scalar_select %p1109, %s30, 0
          %s1111 = sadd.s32 %s1110, %s1108
          %s1112 = smul.addr %s1106, 8
          %s1113 = sadd.s32 %s1111, %s1112
          %s1114 = smul.addr %s1113, 8
          %s1115 = scalar_lea.vmem %s4, %s1114
        $region52: #{tpu_custom_call.1} parent=47 // pred_fallthru
          _
        // Predicated region
        $region53: #{tpu_custom_call.1} parent=47 // pred_check
          %p1116 = pneg %p209
        $region54: #{tpu_custom_call.1} parent=47 // pred_check_branch
          %1118 = sbr.rel (%p1116) target = $region56
        $region55: #{tpu_custom_call.1} parent=47 // pred_region
          %s1119 = sand.u32 %s194, 1
          %s1120 = scalar_lea.sflag [#allocation3], %s1119
          %s1121 = sand.u32 %s194, 1
          %s1122 = smul.addr %s1121, 64
          %s1123 = scalar_lea.vmem [#allocation2], %s1122
          %1125 = dma.done %s1120, 1024
        $region56: #{tpu_custom_call.1} parent=47 // pred_fallthru
          _
      $region48: #{tpu_custom_call.1} parent=5 // pred_fallthru
        _
    $region6: #{tpu_custom_call.1} parent=1 // loop_footer
      %s19 = sadd.s32 1, %s15
    $region7: #{tpu_custom_call.1} parent=1 // loop_footer_branch
      %14 = sbr.rel target = $region3
    $region8: #{tpu_custom_call.1} parent=1 // loop_exit
      _
    %1126 = vsyncpa [#allocation3], 1
    %s1127 = scalar_lea.sflag [#allocation3], 1
    %1128 = vsyncpa %s1127, 1

</llo_original>
